<compile_context>
chip_gen: v7x
topology: tpu7x:2x2x1
jax: 0.10.0
libtpu: 0.0.40
codegen_flags: <defaults>
</compile_context>

<pallas_src>
import functools

import jax
import jax.numpy as jnp
from jax.experimental import pallas as pl
from jax.experimental.pallas import tpu as pltpu

GEM_EPS = 1e-6
BN_EPS = 1e-5


def _int_pow(x, n):
    """x**n for static integer n >= 1 via a multiply chain (VPU only, no EUP)."""
    result = None
    base = x
    while n:
        if n & 1:
            result = base if result is None else result * base
        n >>= 1
        if n:
            base = base * base
    return result


def _head_kernel(p_ref, x_ref, w1_ref, b1_ref, w2_ref, b2_ref, out_ref, acc_ref,
                 *, p_static, inv_hw, acc_lanes, lanes_per_tile):
    """grid = (batch_blocks, spatial_tiles).

    Accumulates sum_hw clamp(x,eps)^p into a lane-wide (Bt, C, acc_lanes) scratch;
    the finalize step of the spatial axis does the single cross-lane reduce and runs
    the whole MLP tail (eval-BN folded into the Linears) as batched MXU matmuls.
    """
    k = pl.program_id(1)

    @pl.when(k == 0)
    def _init():
        acc_ref[...] = jnp.zeros_like(acc_ref)

    def powp(xc):
        if (p_static is not None and float(p_static).is_integer()
                and 1 <= p_static <= 16):
            return _int_pow(xc, int(p_static))        # VPU cube for default p=3
        if p_static is not None:                      # static non-integer p
            return jnp.exp(jnp.float32(p_static) * jnp.log(xc))
        return jnp.exp(p_ref[0, 0] * jnp.log(xc))     # traced / learned p (EUP)

    # Lane-aligned 128-wide chunks: per-chunk load keeps live vregs small; the
    # cross-lane reduction is deferred to the finalize step.
    acc = acc_ref[...]
    for j in range(lanes_per_tile):
        xj = x_ref[:, :, j * acc_lanes:(j + 1) * acc_lanes]   # (Bt, C, acc_lanes)
        acc = acc + powp(jnp.maximum(xj, GEM_EPS))
    acc_ref[...] = acc

    @pl.when(k == pl.num_programs(1) - 1)
    def _finalize():
        pooled = jnp.sum(acc_ref[...], axis=-1) * inv_hw      # (Bt, C), strictly > 0
        if p_static is not None and p_static == 1.0:
            root = pooled
        elif p_static is not None and p_static == 2.0:
            root = jnp.sqrt(pooled)
        elif p_static is not None:
            root = jnp.exp(jnp.log(pooled) * (1.0 / p_static))
        else:
            root = jnp.exp(jnp.log(pooled) / p_ref[0, 0])
        g = root * jax.nn.sigmoid(root)                       # Swish, (Bt, C)

        # Linear 1 (eval BatchNorm folded into w1/b1): batched MXU matmul.
        h1 = jnp.dot(g, w1_ref[...], preferred_element_type=jnp.float32) + b1_ref[...]
        h1 = h1 * jax.nn.sigmoid(h1)                          # Swish, (Bt, hidden)

        # Linear 2 (eval BatchNorm folded into w2/b2): lane-dense padded output.
        h2 = jnp.dot(h1, w2_ref[...], preferred_element_type=jnp.float32) + b2_ref[...]
        out_ref[0] = h2                                       # (Bt, n_pad)


def _static_p(p):
    """Concrete GeM power -> Python float (trace-time specialization); None if traced."""
    try:
        if isinstance(p, (int, float)):
            return float(p)
        return float(jnp.reshape(jnp.asarray(p), (-1,))[0])
    except Exception:          # traced under jit -> generic in-kernel exp/log path
        return None


def _choose_tiling(B, C, HW, elem_bytes=4, target_bytes=2 << 20):
    """Pick (Bt, tile_hw): x tile as close to ~2 MiB as the shape allows, while
    keeping >= 2 batch blocks so the 'parallel' axis shards across both v7x cores."""
    if HW % 128 == 0:
        hw_divs = [d for d in range(128, HW + 1, 128) if HW % d == 0]
    else:
        # TODO(synk): non-128-aligned small HW with large C would be better served by
        # a channels-on-lanes layout ((Bt, HW, Ct) tiles); not needed at demo shapes.
        hw_divs = [HW]
    b_divs = [d for d in range(1, B + 1) if B % d == 0 and (B // d >= 2 or B == 1)]
    best_bt, best_thw, best_bytes = 1, hw_divs[0], 0
    for bt in b_divs:
        for thw in hw_divs:
            nbytes = bt * C * thw * elem_bytes
            if nbytes <= target_bytes and (
                    nbytes > best_bytes or (nbytes == best_bytes and thw > best_thw)):
                best_bt, best_thw, best_bytes = bt, thw, nbytes
    return best_bt, best_thw


def head_forward(x, params):
    """x: (B, C, H, W) float32 with C == nc*2.  Returns (B, n)."""
    B, C, H, W = x.shape
    HW = H * W
    x3 = x.reshape(B, C, HW)                       # flatten spatial onto the lane axis

    hidden = params["w1"].shape[1]
    n = params["w2"].shape[1]
    n_pad = ((n + 127) // 128) * 128

    # Fold eval-mode BatchNorm (scale/shift) into the following Linear layers.
    w1f = params["w1"] * params["bn1_scale"].reshape(C, 1)
    b1f = params["b1"] + params["bn1_shift"] @ params["w1"]
    w2f = params["w2"] * params["bn2_scale"].reshape(hidden, 1)
    b2f = params["b2"] + params["bn2_shift"] @ params["w2"]
    if n_pad != n:                                 # lane-dense output store (sliced below)
        w2f = jnp.pad(w2f, ((0, 0), (0, n_pad - n)))
        b2f = jnp.pad(b2f, ((0, 0), (0, n_pad - n)))

    p_static = _static_p(params["p"])
    p_arr = jnp.asarray(params["p"], jnp.float32).reshape(1, 1)

    bt, tile_hw = _choose_tiling(B, C, HW)
    nb = B // bt
    kt = HW // tile_hw
    acc_lanes = 128 if tile_hw % 128 == 0 else tile_hw
    lanes_per_tile = tile_hw // acc_lanes

    kernel = functools.partial(
        _head_kernel, p_static=p_static, inv_hw=1.0 / float(HW),
        acc_lanes=acc_lanes, lanes_per_tile=lanes_per_tile)

    flops = 4 * B * C * HW + 2 * B * (C * hidden + hidden * n_pad)
    transc = ((0 if (p_static is not None and float(p_static).is_integer())
               else 2 * B * C * HW)
              + B * (2 * C + hidden + n_pad))
    nbytes = 4 * (B * C * HW + C * hidden + hidden * n_pad + B * n_pad + hidden + n_pad)

    out = pl.pallas_call(
        kernel,
        out_shape=jax.ShapeDtypeStruct((nb, bt, n_pad), jnp.float32),
        grid_spec=pltpu.PrefetchScalarGridSpec(
            num_scalar_prefetch=0,
            grid=(nb, kt),
            in_specs=[
                pl.BlockSpec((1, 1), lambda b, k: (0, 0),
                             memory_space=pltpu.MemorySpace.SMEM),        # p (scalar)
                pl.BlockSpec((bt, C, tile_hw), lambda b, k: (b, 0, k)),   # x (pipelined)
                pl.BlockSpec((C, hidden), lambda b, k: (0, 0)),           # w1 (BN folded)
                pl.BlockSpec((1, hidden), lambda b, k: (0, 0)),           # b1
                pl.BlockSpec((hidden, n_pad), lambda b, k: (0, 0)),       # w2 (BN folded)
                pl.BlockSpec((1, n_pad), lambda b, k: (0, 0)),            # b2
            ],
            out_specs=pl.BlockSpec((1, bt, n_pad), lambda b, k: (b, 0, 0)),
            scratch_shapes=[pltpu.VMEM((bt, C, acc_lanes), jnp.float32)],  # pooled sums
        ),
        compiler_params=pltpu.CompilerParams(
            dimension_semantics=("parallel", "arbitrary")),
        cost_estimate=pl.CostEstimate(flops=int(flops), transcendentals=int(transc),
                                      bytes_accessed=int(nbytes)),
    )(p_arr, x3, w1f, b1f, w2f, b2f)

    return out.reshape(B, n_pad)[:, :n]


def make_params(key, nc, n, hidden=512):
    """Deterministic synthetic parameters (module-faithful: raw BN scale/shift kept)."""
    c_in = nc * 2
    ks = jax.random.split(key, 12)

    def linear(kw, kb, fan_in, fan_out):
        bound = 1.0 / jnp.sqrt(fan_in)
        w = jax.random.uniform(kw, (fan_in, fan_out), jnp.float32, -bound, bound)
        b = jax.random.uniform(kb, (1, fan_out), jnp.float32, -bound, bound)
        return w, b

    def bn(kg, kb, km, kv, feat):
        gamma = 1.0 + 0.1 * jax.random.normal(kg, (feat,), jnp.float32)
        beta = 0.1 * jax.random.normal(kb, (feat,), jnp.float32)
        mean = 0.1 * jax.random.normal(km, (feat,), jnp.float32)
        var = jnp.abs(jax.random.normal(kv, (feat,), jnp.float32)) + 0.5
        scale = gamma / jnp.sqrt(var + BN_EPS)
        shift = beta - mean * scale
        return scale.reshape(1, feat), shift.reshape(1, feat)

    w1, b1 = linear(ks[0], ks[1], c_in, hidden)
    w2, b2 = linear(ks[2], ks[3], hidden, n)
    bn1_scale, bn1_shift = bn(ks[4], ks[5], ks[6], ks[7], c_in)
    bn2_scale, bn2_shift = bn(ks[8], ks[9], ks[10], ks[11], hidden)

    return {
        "p": jnp.array([3.0], jnp.float32),   # GeM Parameter(ones(1)*3)
        "bn1_scale": bn1_scale, "bn1_shift": bn1_shift, "w1": w1, "b1": b1,
        "bn2_scale": bn2_scale, "bn2_shift": bn2_shift, "w2": w2, "b2": b2,
    }


def head_reference(x, params):
    """Pure-JAX reference of the same (eval-mode) forward, for verification."""
    p = params["p"][0]
    xc = jnp.maximum(x, GEM_EPS)
    pooled = jnp.mean(xc ** p, axis=(2, 3)) ** (1.0 / p)      # (B, C)
    h = pooled * jax.nn.sigmoid(pooled)
    h = h * params["bn1_scale"] + params["bn1_shift"]
    h = h @ params["w1"] + params["b1"]
    h = h * jax.nn.sigmoid(h)
    h = h * params["bn2_scale"] + params["bn2_shift"]
    return h @ params["w2"] + params["b2"]


if __name__ == "__main__":
    # Head(nc=4, n=5): input must have nc*2 = 8 channels for the 'swish' path.
    nc, n = 4, 5
    B, C, H, W = 8, nc * 2, 32, 32                # HW=1024 -> Bt=4 batch-blocked tiles

    key = jax.random.PRNGKey(0)
    kx, kp = jax.random.split(key)
    x = jax.random.normal(kx, (B, C, H, W), jnp.float32)
    params = make_params(kp, nc, n)

    # Specialized p == 3 (VPU multiply-chain) path.
    out = jax.block_until_ready(head_forward(x, params))
    ref = head_reference(x, params)
    assert out.shape == (B, n)
    assert jnp.allclose(out, ref, atol=1e-4, rtol=1e-4), (out, ref)

    # Static non-integer p path (constant exp/log).
    params_g = dict(params, p=jnp.array([2.5], jnp.float32))
    out_g = jax.block_until_ready(head_forward(x, params_g))
    ref_g = head_reference(x, params_g)
    assert jnp.allclose(out_g, ref_g, atol=1e-4, rtol=1e-4), (out_g, ref_g)

    # Traced-p fallback path (p read from SMEM inside the kernel, under jit).
    jitted = jax.jit(lambda xx, pp: head_forward(xx, dict(params, p=pp)))
    out_j = jax.block_until_ready(jitted(x, jnp.array([2.5], jnp.float32)))
    assert jnp.allclose(out_j, ref_g, atol=1e-4, rtol=1e-4), (out_j, ref_g)

    # TODO(synk): Dropout(p=0.5) is an identity in eval mode; training-mode
    # dropout / batch-statistics BatchNorm are not modeled here.
    print("KERNEL_OK")
</pallas_src>

<mosaic_0001>
module attributes {stable_mosaic.version = 11 : i64} {
  func.func @_head_kernel(%arg0: i32, %arg1: i32, %arg2: memref<1x1xf32, #tpu.memory_space<smem>>, %arg3: memref<4x8x1024xf32, #tpu.memory_space<vmem>>, %arg4: memref<8x512xf32, #tpu.memory_space<vmem>>, %arg5: memref<1x512xf32, #tpu.memory_space<vmem>>, %arg6: memref<512x128xf32, #tpu.memory_space<vmem>>, %arg7: memref<1x128xf32, #tpu.memory_space<vmem>>, %arg8: memref<1x4x128xf32, #tpu.memory_space<vmem>>, %arg9: memref<4x8x128xf32, #tpu.memory_space<vmem>>) attributes {dimension_semantics = [#tpu.dimension_semantics<parallel>, #tpu.dimension_semantics<arbitrary>], iteration_bounds = array<i64: 2, 1>, scalar_prefetch = 0 : i64, scratch_operands = 1 : i64, tpu.core_type = #tpu.core_type<tc>, window_params = [{transform_indices = @transform_0, window_bounds = array<i64: 1, 1>}, {transform_indices = @transform_1, window_bounds = array<i64: 4, 8, 1024>}, {pipeline_mode = #tpu.pipeline_mode<synchronous>, transform_indices = @transform_2, window_bounds = array<i64: 8, 512>}, {pipeline_mode = #tpu.pipeline_mode<synchronous>, transform_indices = @transform_3, window_bounds = array<i64: 1, 512>}, {pipeline_mode = #tpu.pipeline_mode<synchronous>, transform_indices = @transform_4, window_bounds = array<i64: 512, 128>}, {pipeline_mode = #tpu.pipeline_mode<synchronous>, transform_indices = @transform_5, window_bounds = array<i64: 1, 128>}, {transform_indices = @transform_6, window_bounds = array<i64: 1, 4, 128>}]} {
    %c0_i32 = arith.constant 0 : i32
    %0 = arith.cmpi eq, %arg1, %c0_i32 : i32
    %1 = arith.extui %0 : i1 to i32
    %c0_i32_0 = arith.constant 0 : i32
    %2 = arith.cmpi ne, %1, %c0_i32_0 : i32
    scf.if %2 {
      %cst_32 = arith.constant 0.000000e+00 : f32
      %56 = vector.broadcast %cst_32 : f32 to vector<4x8x128xf32>
      %c0_33 = arith.constant 0 : index
      %c0_34 = arith.constant 0 : index
      %c0_35 = arith.constant 0 : index
      %57 = vector.load %arg9[%c0_33, %c0_34, %c0_35] : memref<4x8x128xf32, #tpu.memory_space<vmem>>, vector<4x8x128xf32>
      tpu.vector_store %arg9[%c0_33, %c0_34, %c0_35], %56 {strides = array<i32>} : memref<4x8x128xf32, #tpu.memory_space<vmem>>, vector<4x8x128xf32>,
    } else {
    }
    %c0 = arith.constant 0 : index
    %c0_1 = arith.constant 0 : index
    %c0_2 = arith.constant 0 : index
    %3 = vector.load %arg9[%c0, %c0_1, %c0_2] : memref<4x8x128xf32, #tpu.memory_space<vmem>>, vector<4x8x128xf32>
    %c0_3 = arith.constant 0 : index
    %c0_4 = arith.constant 0 : index
    %c0_5 = arith.constant 0 : index
    %4 = vector.load %arg3[%c0_3, %c0_4, %c0_5] : memref<4x8x1024xf32, #tpu.memory_space<vmem>>, vector<4x8x128xf32>
    %cst = arith.constant 9.99999997E-7 : f32
    %5 = vector.broadcast %cst : f32 to vector<4x8x128xf32>
    %6 = arith.maximumf %4, %5 : vector<4x8x128xf32>
    %7 = arith.mulf %6, %6 : vector<4x8x128xf32>
    %8 = arith.mulf %6, %7 : vector<4x8x128xf32>
    %9 = arith.addf %3, %8 : vector<4x8x128xf32>
    %c0_6 = arith.constant 0 : index
    %c0_7 = arith.constant 0 : index
    %c128 = arith.constant 128 : index
    %10 = vector.load %arg3[%c0_6, %c0_7, %c128] : memref<4x8x1024xf32, #tpu.memory_space<vmem>>, vector<4x8x128xf32>
    %cst_8 = arith.constant 9.99999997E-7 : f32
    %11 = vector.broadcast %cst_8 : f32 to vector<4x8x128xf32>
    %12 = arith.maximumf %10, %11 : vector<4x8x128xf32>
    %13 = arith.mulf %12, %12 : vector<4x8x128xf32>
    %14 = arith.mulf %12, %13 : vector<4x8x128xf32>
    %15 = arith.addf %9, %14 : vector<4x8x128xf32>
    %c0_9 = arith.constant 0 : index
    %c0_10 = arith.constant 0 : index
    %c256 = arith.constant 256 : index
    %16 = vector.load %arg3[%c0_9, %c0_10, %c256] : memref<4x8x1024xf32, #tpu.memory_space<vmem>>, vector<4x8x128xf32>
    %cst_11 = arith.constant 9.99999997E-7 : f32
    %17 = vector.broadcast %cst_11 : f32 to vector<4x8x128xf32>
    %18 = arith.maximumf %16, %17 : vector<4x8x128xf32>
    %19 = arith.mulf %18, %18 : vector<4x8x128xf32>
    %20 = arith.mulf %18, %19 : vector<4x8x128xf32>
    %21 = arith.addf %15, %20 : vector<4x8x128xf32>
    %c0_12 = arith.constant 0 : index
    %c0_13 = arith.constant 0 : index
    %c384 = arith.constant 384 : index
    %22 = vector.load %arg3[%c0_12, %c0_13, %c384] : memref<4x8x1024xf32, #tpu.memory_space<vmem>>, vector<4x8x128xf32>
    %cst_14 = arith.constant 9.99999997E-7 : f32
    %23 = vector.broadcast %cst_14 : f32 to vector<4x8x128xf32>
    %24 = arith.maximumf %22, %23 : vector<4x8x128xf32>
    %25 = arith.mulf %24, %24 : vector<4x8x128xf32>
    %26 = arith.mulf %24, %25 : vector<4x8x128xf32>
    %27 = arith.addf %21, %26 : vector<4x8x128xf32>
    %c0_15 = arith.constant 0 : index
    %c0_16 = arith.constant 0 : index
    %c512 = arith.constant 512 : index
    %28 = vector.load %arg3[%c0_15, %c0_16, %c512] : memref<4x8x1024xf32, #tpu.memory_space<vmem>>, vector<4x8x128xf32>
    %cst_17 = arith.constant 9.99999997E-7 : f32
    %29 = vector.broadcast %cst_17 : f32 to vector<4x8x128xf32>
    %30 = arith.maximumf %28, %29 : vector<4x8x128xf32>
    %31 = arith.mulf %30, %30 : vector<4x8x128xf32>
    %32 = arith.mulf %30, %31 : vector<4x8x128xf32>
    %33 = arith.addf %27, %32 : vector<4x8x128xf32>
    %c0_18 = arith.constant 0 : index
    %c0_19 = arith.constant 0 : index
    %c640 = arith.constant 640 : index
    %34 = vector.load %arg3[%c0_18, %c0_19, %c640] : memref<4x8x1024xf32, #tpu.memory_space<vmem>>, vector<4x8x128xf32>
    %cst_20 = arith.constant 9.99999997E-7 : f32
    %35 = vector.broadcast %cst_20 : f32 to vector<4x8x128xf32>
    %36 = arith.maximumf %34, %35 : vector<4x8x128xf32>
    %37 = arith.mulf %36, %36 : vector<4x8x128xf32>
    %38 = arith.mulf %36, %37 : vector<4x8x128xf32>
    %39 = arith.addf %33, %38 : vector<4x8x128xf32>
    %c0_21 = arith.constant 0 : index
    %c0_22 = arith.constant 0 : index
    %c768 = arith.constant 768 : index
    %40 = vector.load %arg3[%c0_21, %c0_22, %c768] : memref<4x8x1024xf32, #tpu.memory_space<vmem>>, vector<4x8x128xf32>
    %cst_23 = arith.constant 9.99999997E-7 : f32
    %41 = vector.broadcast %cst_23 : f32 to vector<4x8x128xf32>
    %42 = arith.maximumf %40, %41 : vector<4x8x128xf32>
    %43 = arith.mulf %42, %42 : vector<4x8x128xf32>
    %44 = arith.mulf %42, %43 : vector<4x8x128xf32>
    %45 = arith.addf %39, %44 : vector<4x8x128xf32>
    %c0_24 = arith.constant 0 : index
    %c0_25 = arith.constant 0 : index
    %c896 = arith.constant 896 : index
    %46 = vector.load %arg3[%c0_24, %c0_25, %c896] : memref<4x8x1024xf32, #tpu.memory_space<vmem>>, vector<4x8x128xf32>
    %cst_26 = arith.constant 9.99999997E-7 : f32
    %47 = vector.broadcast %cst_26 : f32 to vector<4x8x128xf32>
    %48 = arith.maximumf %46, %47 : vector<4x8x128xf32>
    %49 = arith.mulf %48, %48 : vector<4x8x128xf32>
    %50 = arith.mulf %48, %49 : vector<4x8x128xf32>
    %51 = arith.addf %45, %50 : vector<4x8x128xf32>
    %c0_27 = arith.constant 0 : index
    %c0_28 = arith.constant 0 : index
    %c0_29 = arith.constant 0 : index
    %52 = vector.load %arg9[%c0_27, %c0_28, %c0_29] : memref<4x8x128xf32, #tpu.memory_space<vmem>>, vector<4x8x128xf32>
    tpu.vector_store %arg9[%c0_27, %c0_28, %c0_29], %51 {strides = array<i32>} : memref<4x8x128xf32, #tpu.memory_space<vmem>>, vector<4x8x128xf32>,
    %c0_i32_30 = arith.constant 0 : i32
    %53 = arith.cmpi eq, %arg1, %c0_i32_30 : i32
    %54 = arith.extui %53 : i1 to i32
    %c0_i32_31 = arith.constant 0 : i32
    %55 = arith.cmpi ne, %54, %c0_i32_31 : i32
    scf.if %55 {
      %c0_32 = arith.constant 0 : index
      %c0_33 = arith.constant 0 : index
      %c0_34 = arith.constant 0 : index
      %56 = vector.load %arg9[%c0_32, %c0_33, %c0_34] : memref<4x8x128xf32, #tpu.memory_space<vmem>>, vector<4x8x128xf32>
      %cst_35 = arith.constant dense<0.000000e+00> : vector<4x8xf32>
      %57 = vector.multi_reduction <add>, %56, %cst_35 [2] : vector<4x8x128xf32> to vector<4x8xf32>
      %cst_36 = arith.constant 9.765625E-4 : f32
      %58 = vector.broadcast %cst_36 : f32 to vector<4x8xf32>
      %59 = arith.mulf %57, %58 : vector<4x8xf32>
      %60 = math.log %59 : vector<4x8xf32>
      %cst_37 = arith.constant 0.333333343 : f32
      %61 = vector.broadcast %cst_37 : f32 to vector<4x8xf32>
      %62 = arith.mulf %60, %61 : vector<4x8xf32>
      %63 = math.exp %62 : vector<4x8xf32>
      %64 = arith.negf %63 : vector<4x8xf32>
      %65 = math.exp %64 : vector<4x8xf32>
      %cst_38 = arith.constant 1.000000e+00 : f32
      %66 = vector.broadcast %cst_38 : f32 to vector<4x8xf32>
      %67 = arith.addf %66, %65 : vector<4x8xf32>
      %68 = arith.divf %66, %67 : vector<4x8xf32>
      %69 = arith.mulf %63, %68 : vector<4x8xf32>
      %c0_39 = arith.constant 0 : index
      %c0_40 = arith.constant 0 : index
      %70 = vector.load %arg4[%c0_39, %c0_40] : memref<8x512xf32, #tpu.memory_space<vmem>>, vector<8x512xf32>
      %cst_41 = arith.constant dense<0.000000e+00> : vector<4x512xf32>
      %71 = tpu.matmul %69, %70, %cst_41 {dimension_numbers = #tpu.dot_dimension_numbers<[1], [0], [0], [1], [0, 0, 1, 1], [], []>} : vector<4x8xf32>, vector<8x512xf32>, vector<4x512xf32> -> vector<4x512xf32>
      %c0_42 = arith.constant 0 : index
      %c0_43 = arith.constant 0 : index
      %72 = vector.load %arg5[%c0_42, %c0_43] : memref<1x512xf32, #tpu.memory_space<vmem>>, vector<1x512xf32>
      %73 = vector.broadcast %72 : vector<1x512xf32> to vector<4x512xf32>
      %74 = arith.addf %71, %73 : vector<4x512xf32>
      %75 = arith.negf %74 : vector<4x512xf32>
      %76 = math.exp %75 : vector<4x512xf32>
      %cst_44 = arith.constant 1.000000e+00 : f32
      %77 = vector.broadcast %cst_44 : f32 to vector<4x512xf32>
      %78 = arith.addf %77, %76 : vector<4x512xf32>
      %79 = arith.divf %77, %78 : vector<4x512xf32>
      %80 = arith.mulf %74, %79 : vector<4x512xf32>
      %c0_45 = arith.constant 0 : index
      %c0_46 = arith.constant 0 : index
      %81 = vector.load %arg6[%c0_45, %c0_46] : memref<512x128xf32, #tpu.memory_space<vmem>>, vector<512x128xf32>
      %cst_47 = arith.constant dense<0.000000e+00> : vector<4x128xf32>
      %82 = tpu.matmul %80, %81, %cst_47 {dimension_numbers = #tpu.dot_dimension_numbers<[1], [0], [0], [1], [0, 0, 1, 1], [], []>} : vector<4x512xf32>, vector<512x128xf32>, vector<4x128xf32> -> vector<4x128xf32>
      %c0_48 = arith.constant 0 : index
      %c0_49 = arith.constant 0 : index
      %83 = vector.load %arg7[%c0_48, %c0_49] : memref<1x128xf32, #tpu.memory_space<vmem>>, vector<1x128xf32>
      %84 = vector.broadcast %83 : vector<1x128xf32> to vector<4x128xf32>
      %85 = arith.addf %82, %84 : vector<4x128xf32>
      %c0_50 = arith.constant 0 : index
      %c0_51 = arith.constant 0 : index
      %c0_52 = arith.constant 0 : index
      %86 = vector.load %arg8[%c0_50, %c0_51, %c0_52] : memref<1x4x128xf32, #tpu.memory_space<vmem>>, vector<1x4x128xf32>
      %87 = vector.shape_cast %86 : vector<1x4x128xf32> to vector<4x128xf32>
      %88 = vector.shape_cast %85 : vector<4x128xf32> to vector<1x4x128xf32>
      tpu.vector_store %arg8[%c0_50, %c0_51, %c0_52], %88 {strides = array<i32>} : memref<1x4x128xf32, #tpu.memory_space<vmem>>, vector<1x4x128xf32>,
    } else {
    }
    return
  }
  func.func @transform_0(%arg0: i32, %arg1: i32) -> (i32, i32) {
    %c0_i32 = arith.constant 0 : i32
    %c0_i32_0 = arith.constant 0 : i32
    %c0_i32_1 = arith.constant 0 : i32
    return %c0_i32, %c0_i32_0 : i32, i32
  }
  func.func @transform_1(%arg0: i32, %arg1: i32) -> (i32, i32, i32) {
    %c0_i32 = arith.constant 0 : i32
    %c0_i32_0 = arith.constant 0 : i32
    return %arg0, %c0_i32, %arg1 : i32, i32, i32
  }
  func.func @transform_2(%arg0: i32, %arg1: i32) -> (i32, i32) {
    %c0_i32 = arith.constant 0 : i32
    %c0_i32_0 = arith.constant 0 : i32
    %c0_i32_1 = arith.constant 0 : i32
    return %c0_i32, %c0_i32_0 : i32, i32
  }
  func.func @transform_3(%arg0: i32, %arg1: i32) -> (i32, i32) {
    %c0_i32 = arith.constant 0 : i32
    %c0_i32_0 = arith.constant 0 : i32
    %c0_i32_1 = arith.constant 0 : i32
    return %c0_i32, %c0_i32_0 : i32, i32
  }
  func.func @transform_4(%arg0: i32, %arg1: i32) -> (i32, i32) {
    %c0_i32 = arith.constant 0 : i32
    %c0_i32_0 = arith.constant 0 : i32
    %c0_i32_1 = arith.constant 0 : i32
    return %c0_i32, %c0_i32_0 : i32, i32
  }
  func.func @transform_5(%arg0: i32, %arg1: i32) -> (i32, i32) {
    %c0_i32 = arith.constant 0 : i32
    %c0_i32_0 = arith.constant 0 : i32
    %c0_i32_1 = arith.constant 0 : i32
    return %c0_i32, %c0_i32_0 : i32, i32
  }
  func.func @transform_6(%arg0: i32, %arg1: i32) -> (i32, i32, i32) {
    %c0_i32 = arith.constant 0 : i32
    %c0_i32_0 = arith.constant 0 : i32
    %c0_i32_1 = arith.constant 0 : i32
    return %arg0, %c0_i32, %c0_i32_0 : i32, i32, i32
  }
}

</mosaic_0001>

<llo_original>
// kernel: tpu_custom_call.1
$region0: #{tpu_custom_call.1}
  #allocation0 [shape = 'u32[]', space=smem, size = 0x4, offset = 0x4, fixed_abs, tag = 'smem constant byte address 0x4 - core index']
  #allocation1 [shape = 'u32[144,128]{1,0:T(1,128)}', space=vmem, size = 0x12000, scoped, tag = 'internal scratch']
  #allocation2 [shape = 'f32[4,8,128]{2,1,0:T(8,128)}', space=vmem, size = 0x4000, scoped, tag = 'scratch operand']
  #allocation3 [shape = 'f32[1,1]{1,0:T(1,128)S(6)}', space=smem, size = 0x200, scoped, tag = 'scoped memory for tpu_custom_call.1']
  %s0 = inlined_call_operand.<no memory space> [shape: f32[1,1], index: 0, kind: input, shape index: {}]
  %s1 = inlined_call_operand.hbm [shape: f32[8,8,1024], index: 1, kind: input, shape index: {}]
  %s2 = inlined_call_operand.hbm [shape: f32[8,512], index: 2, kind: input, shape index: {}]
  %s3 = inlined_call_operand.vmem [shape: f32[1,512], index: 3, kind: input, shape index: {}]
  %s4 = inlined_call_operand.hbm [shape: f32[512,128], index: 4, kind: input, shape index: {}]
  %s5 = inlined_call_operand.vmem [shape: f32[1,128], index: 5, kind: input, shape index: {}]
  %s6 = inlined_call_operand.hbm [shape: f32[2,4,128], index: 6, kind: output, shape index: {}]
  %s7 = sld [smem:[#allocation0]]
  $region77: #{tpu_custom_call.1} parent=0
    _
  %s9 = ssub.s32 1, %s7
  %s10 = scalar_select 0, %s9, %s7
  %11 = sst [smem:[#allocation3]] %s0
  $region1: #{tpu_custom_call.1} parent=0
    #allocation4 [shape = 'u8[262144]{0}', space=vmem, size = 0x40000, scoped, tag = 'input window, operand 1']
    #allocation5 [shape = 's32[2]{0}', space=sflag, size = 0x8, scoped, tag = 'scoped memory for tpu_custom_call.1']
    #allocation6 [shape = 's32[2]{0}', space=sflag, size = 0x8, scoped, tag = 'scoped memory for tpu_custom_call.1']
    #allocation7 [shape = 'u8[16384]{0}', space=vmem, size = 0x4000, scoped, tag = 'input window, operand 2, single buffered']
    #allocation8 [shape = 's32[1]{0}', space=sflag, size = 0x4, scoped, tag = 'scoped memory for tpu_custom_call.1']
    #allocation9 [shape = 'u8[262144]{0}', space=vmem, size = 0x40000, scoped, tag = 'input window, operand 4, single buffered']
    #allocation10 [shape = 'u8[4096]{0}', space=vmem, size = 0x1000, scoped, tag = 'output window, operand 0']
    %12 = vsyncpa [#allocation5], 0
    %s13 = scalar_lea.sflag [#allocation5], 1
    %14 = vsyncpa %s13, 0
    %15 = vsyncpa [#allocation8], 0
    %16 = vsyncpa [#allocation6], 0
    %s17 = scalar_lea.sflag [#allocation6], 1
    %18 = vsyncpa %s17, 0
    loop: start=0, step=1, limit=4
    $region2: #{tpu_custom_call.1} parent=1 // loop_pre_header
      _
    $region3: #{tpu_custom_call.1} parent=1 // loop_header
      %s20 = sphi 0, %s24
      %p21 = scmp.ge.s32.totalorder %s20, 4
      %s27 = sphi 0, %s39
      %s28 = sphi 0, %s35
      %s29 = sphi 0, %s27
      %s30 = sphi 0, %s28
      %s31 = sphi 0, %s29
      %s32 = sphi 0, %s30
      %s40 = sphi 0, %s40
      %s42 = sphi 0, %s40
      %s43 = sphi 0, %s42
      %s57 = sphi 0, %s43
      %s65 = sphi 0, %s67
      %s68 = sphi 0, %s65
      %s69 = sphi 0, %s68
      %s85 = sphi 0, %s69
      %s89 = sphi 0, %s89
      %s91 = sphi 0, %s89
      %s92 = sphi 0, %s91
      %s106 = sphi 0, %s92
      %s110 = sphi 0, %s110
      %s112 = sphi 0, %s110
      %s113 = sphi 0, %s112
      %s127 = sphi 0, %s113
      %s131 = sphi 0, %s131
      %s133 = sphi 0, %s131
      %s134 = sphi 0, %s133
      %s148 = sphi 0, %s134
      %s152 = sphi 0, %s152
      %s154 = sphi 0, %s152
      %s155 = sphi 0, %s154
      %s169 = sphi 0, %s155
      %s175 = sphi 0, %s177
      %s178 = sphi 0, %s175
      %s179 = sphi 0, %s178
      %s195 = sphi 0, %s179
    $region4: #{tpu_custom_call.1} parent=1 // loop_header_branch
      %23 = sbr.rel (%p21) target = $region8
    $region5: #{tpu_custom_call.1} parent=1 // loop_body
      %s25 = ssub.s32 %s20, 1
      %s26 = ssub.s32 %s20, 2
      %s33 = sadd.s32 1, %s28
      %p34 = scmp.ge.s32.totalorder %s33, 1
      %s35 = scalar_select %p34, 0, %s33
      %s36 = sadd.s32 1, %s27
      %s37 = scalar_select %p34, %s36, %s27
      %p38 = scmp.ge.s32.totalorder %s37, 2
      %s39 = scalar_select %p38, 0, %s37
      %s41 = sadd.s32 %s40, 1
      %p44 = scmp.eq.s32.totalorder %s20, 1
      %p45 = scmp.ne.s32.totalorder %s40, %s42
      %p46 = scmp.eq.s32.totalorder %s20, 0
      %p47 = por %p45, %p46
      %p48 = scmp.ne.s32.totalorder %s40, %s42
      %p49 = scmp.eq.s32.totalorder %s25, 1
      %p50 = por %p48, %p49
      %p51 = scmp.ne.s32.totalorder %s42, %s43
      %p52 = scmp.eq.s32.totalorder %s25, 0
      %p53 = por %p51, %p52
      %p54 = scmp.ne.s32.totalorder %s42, %s43
      %p55 = scmp.eq.s32.totalorder %s26, 1
      %p56 = por %p54, %p55
      %p58 = scmp.ne.s32.totalorder %s43, %s57
      %p59 = scmp.eq.s32.totalorder %s26, 0
      %p60 = por %p58, %p59
      %s61 = ssub.s32 %s27, %s39
      %s62 = ssub.s32 %s28, %s35
      %s63 = sor.u32 %s61, %s62
      %p64 = scmp.eq.s32.totalorder %s63, 0
      %s66 = sadd.s32 %s65, 1
      %s67 = scalar_select %p64, %s65, %s66
      %p70 = pneg %p64
      %p71 = scmp.eq.s32.totalorder %s20, 1
      %p72 = por %p70, %p71
      %p73 = scmp.ne.s32.totalorder %s65, %s68
      %p74 = scmp.eq.s32.totalorder %s20, 0
      %p75 = por %p73, %p74
      %p76 = scmp.ne.s32.totalorder %s65, %s68
      %p77 = scmp.eq.s32.totalorder %s25, 1
      %p78 = por %p76, %p77
      %p79 = scmp.ne.s32.totalorder %s68, %s69
      %p80 = scmp.eq.s32.totalorder %s25, 0
      %p81 = por %p79, %p80
      %p82 = scmp.ne.s32.totalorder %s68, %s69
      %p83 = scmp.eq.s32.totalorder %s26, 1
      %p84 = por %p82, %p83
      %p86 = scmp.ne.s32.totalorder %s69, %s85
      %p87 = scmp.eq.s32.totalorder %s26, 0
      %p88 = por %p86, %p87
      %s90 = sadd.s32 %s89, 1
      %p93 = scmp.eq.s32.totalorder %s20, 1
      %p94 = scmp.ne.s32.totalorder %s89, %s91
      %p95 = scmp.eq.s32.totalorder %s20, 0
      %p96 = por %p94, %p95
      %p97 = scmp.ne.s32.totalorder %s89, %s91
      %p98 = scmp.eq.s32.totalorder %s25, 1
      %p99 = por %p97, %p98
      %p100 = scmp.ne.s32.totalorder %s91, %s92
      %p101 = scmp.eq.s32.totalorder %s25, 0
      %p102 = por %p100, %p101
      %p103 = scmp.ne.s32.totalorder %s91, %s92
      %p104 = scmp.eq.s32.totalorder %s26, 1
      %p105 = por %p103, %p104
      %p107 = scmp.ne.s32.totalorder %s92, %s106
      %p108 = scmp.eq.s32.totalorder %s26, 0
      %p109 = por %p107, %p108
      %s111 = sadd.s32 %s110, 1
      %p114 = scmp.eq.s32.totalorder %s20, 1
      %p115 = scmp.ne.s32.totalorder %s110, %s112
      %p116 = scmp.eq.s32.totalorder %s20, 0
      %p117 = por %p115, %p116
      %p118 = scmp.ne.s32.totalorder %s110, %s112
      %p119 = scmp.eq.s32.totalorder %s25, 1
      %p120 = por %p118, %p119
      %p121 = scmp.ne.s32.totalorder %s112, %s113
      %p122 = scmp.eq.s32.totalorder %s25, 0
      %p123 = por %p121, %p122
      %p124 = scmp.ne.s32.totalorder %s112, %s113
      %p125 = scmp.eq.s32.totalorder %s26, 1
      %p126 = por %p124, %p125
      %p128 = scmp.ne.s32.totalorder %s113, %s127
      %p129 = scmp.eq.s32.totalorder %s26, 0
      %p130 = por %p128, %p129
      %s132 = sadd.s32 %s131, 1
      %p135 = scmp.eq.s32.totalorder %s20, 1
      %p136 = scmp.ne.s32.totalorder %s131, %s133
      %p137 = scmp.eq.s32.totalorder %s20, 0
      %p138 = por %p136, %p137
      %p139 = scmp.ne.s32.totalorder %s131, %s133
      %p140 = scmp.eq.s32.totalorder %s25, 1
      %p141 = por %p139, %p140
      %p142 = scmp.ne.s32.totalorder %s133, %s134
      %p143 = scmp.eq.s32.totalorder %s25, 0
      %p144 = por %p142, %p143
      %p145 = scmp.ne.s32.totalorder %s133, %s134
      %p146 = scmp.eq.s32.totalorder %s26, 1
      %p147 = por %p145, %p146
      %p149 = scmp.ne.s32.totalorder %s134, %s148
      %p150 = scmp.eq.s32.totalorder %s26, 0
      %p151 = por %p149, %p150
      %s153 = sadd.s32 %s152, 1
      %p156 = scmp.eq.s32.totalorder %s20, 1
      %p157 = scmp.ne.s32.totalorder %s152, %s154
      %p158 = scmp.eq.s32.totalorder %s20, 0
      %p159 = por %p157, %p158
      %p160 = scmp.ne.s32.totalorder %s152, %s154
      %p161 = scmp.eq.s32.totalorder %s25, 1
      %p162 = por %p160, %p161
      %p163 = scmp.ne.s32.totalorder %s154, %s155
      %p164 = scmp.eq.s32.totalorder %s25, 0
      %p165 = por %p163, %p164
      %p166 = scmp.ne.s32.totalorder %s154, %s155
      %p167 = scmp.eq.s32.totalorder %s26, 1
      %p168 = por %p166, %p167
      %p170 = scmp.ne.s32.totalorder %s155, %s169
      %p171 = scmp.eq.s32.totalorder %s26, 0
      %p172 = por %p170, %p171
      %s173 = ssub.s32 %s27, %s39
      %p174 = scmp.eq.s32.totalorder %s173, 0
      %s176 = sadd.s32 %s175, 1
      %s177 = scalar_select %p174, %s175, %s176
      %p180 = pneg %p174
      %p181 = scmp.eq.s32.totalorder %s20, 1
      %p182 = por %p180, %p181
      %p183 = scmp.ne.s32.totalorder %s175, %s178
      %p184 = scmp.eq.s32.totalorder %s20, 0
      %p185 = por %p183, %p184
      %p186 = scmp.ne.s32.totalorder %s175, %s178
      %p187 = scmp.eq.s32.totalorder %s25, 1
      %p188 = por %p186, %p187
      %p189 = scmp.ne.s32.totalorder %s178, %s179
      %p190 = scmp.eq.s32.totalorder %s25, 0
      %p191 = por %p189, %p190
      %p192 = scmp.ne.s32.totalorder %s178, %s179
      %p193 = scmp.eq.s32.totalorder %s26, 1
      %p194 = por %p192, %p193
      %p196 = scmp.ne.s32.totalorder %s179, %s195
      %p197 = scmp.eq.s32.totalorder %s26, 0
      %p198 = por %p196, %p197
      %p199 = scmp.le.s32.totalorder 1, %s20
      %p200 = scmp.lt.s32.totalorder %s20, 3
      %p201 = pnand %p199, %p200
      %p202 = pneg %p201
      // Predicated region
      $region9: #{tpu_custom_call.1} parent=5 // pred_check
        _
      $region10: #{tpu_custom_call.1} parent=5 // pred_check_branch
        %204 = sbr.rel (%p201) target = $region12
      $region11: #{tpu_custom_call.1} parent=5 // pred_region
        %s205 = ssub.s32 %s20, 1
        // Predicated region
        $region13: #{tpu_custom_call.1} parent=11 // pred_check
          %p206 = pneg %p53
        $region14: #{tpu_custom_call.1} parent=11 // pred_check_branch
          %208 = sbr.rel (%p206) target = $region16
        $region15: #{tpu_custom_call.1} parent=11 // pred_region
          _
        $region16: #{tpu_custom_call.1} parent=11 // pred_fallthru
          _
        // Predicated region
        $region17: #{tpu_custom_call.1} parent=11 // pred_check
          %p209 = pneg %p102
        $region18: #{tpu_custom_call.1} parent=11 // pred_check_branch
          %211 = sbr.rel (%p209) target = $region20
        $region19: #{tpu_custom_call.1} parent=11 // pred_region
          %s213 = ssub.s32 512, 512
          %214 = vsyncadd [#allocation8], %s213
          %s216 = sshll.u32 [#allocation7], 4
          %s217 = int_to_ptr.vmem [resolvable:$true] %s216
          %219 = dma.hbm_to_vmem [thread:$0]  %s2, 512, %s217, [#allocation8]
        $region20: #{tpu_custom_call.1} parent=11 // pred_fallthru
          _
        // Predicated region
        $region21: #{tpu_custom_call.1} parent=11 // pred_check
          %p220 = pneg %p123
        $region22: #{tpu_custom_call.1} parent=11 // pred_check_branch
          %222 = sbr.rel (%p220) target = $region24
        $region23: #{tpu_custom_call.1} parent=11 // pred_region
          _
        $region24: #{tpu_custom_call.1} parent=11 // pred_fallthru
          _
        // Predicated region
        $region25: #{tpu_custom_call.1} parent=11 // pred_check
          %p223 = pneg %p144
        $region26: #{tpu_custom_call.1} parent=11 // pred_check_branch
          %225 = sbr.rel (%p223) target = $region28
        $region27: #{tpu_custom_call.1} parent=11 // pred_region
          %s227 = ssub.s32 8192, 8192
          %228 = vsyncadd [#allocation8], %s227
          %s229 = sshll.u32 [#allocation9], 4
          %s230 = int_to_ptr.vmem [resolvable:$true] %s229
          %235 = dma.hbm_to_vmem [thread:$0]  %s4, 8192, %s230, [#allocation8], 128, 128, 8
        $region28: #{tpu_custom_call.1} parent=11 // pred_fallthru
          _
        // Predicated region
        $region29: #{tpu_custom_call.1} parent=11 // pred_check
          %p236 = pneg %p165
        $region30: #{tpu_custom_call.1} parent=11 // pred_check_branch
          %238 = sbr.rel (%p236) target = $region32
        $region31: #{tpu_custom_call.1} parent=11 // pred_region
          _
        $region32: #{tpu_custom_call.1} parent=11 // pred_fallthru
          _
      $region12: #{tpu_custom_call.1} parent=5 // pred_fallthru
        _
      %p239 = scmp.lt.s32.totalorder %s20, 2
      // Predicated region
      $region33: #{tpu_custom_call.1} parent=5 // pred_check
        %p240 = pneg %p239
      $region34: #{tpu_custom_call.1} parent=5 // pred_check_branch
        %242 = sbr.rel (%p240) target = $region36
      $region35: #{tpu_custom_call.1} parent=5 // pred_region
        // Predicated region
        $region37: #{tpu_custom_call.1} parent=35 // pred_check
          %p243 = pneg %p75
        $region38: #{tpu_custom_call.1} parent=35 // pred_check_branch
          %245 = sbr.rel (%p243) target = $region40
        $region39: #{tpu_custom_call.1} parent=35 // pred_region
          %s246 = sand.u32 %s65, 1
          %s247 = scalar_lea.sflag [#allocation5], %s246
          %s248 = sand.u32 %s65, 1
          %s249 = smul.addr %s248, 256
          %s250 = scalar_lea.vmem [#allocation4], %s249
          %s251 = smul.u32 4, %s27
          %s252 = smul.u32 8, %s28
          %s254 = ssub.s32 4096, 4096
          %255 = vsyncadd %s247, %s254
          %s256 = smul.addr %s251, 8
          %s257 = sadd.s32 %s252, %s256
          %s258 = smul.addr %s257, 128
          %s259 = scalar_lea.hbm %s1, %s258
          %s260 = sshll.u32 %s250, 4
          %s261 = int_to_ptr.vmem [resolvable:$true] %s260
          %266 = dma.hbm_to_vmem [thread:$0]  %s259, 4096, %s261, %s247, 1024, 1024, 64
        $region40: #{tpu_custom_call.1} parent=35 // pred_fallthru
          _
      $region36: #{tpu_custom_call.1} parent=5 // pred_fallthru
        _
      %p267 = scmp.le.s32.totalorder 1, %s20
      %p268 = scmp.lt.s32.totalorder %s20, 3
      %p269 = pnand %p267, %p268
      %p270 = pneg %p269
      // Predicated region
      $region41: #{tpu_custom_call.1} parent=5 // pred_check
        _
      $region42: #{tpu_custom_call.1} parent=5 // pred_check_branch
        %272 = sbr.rel (%p269) target = $region44
      $region43: #{tpu_custom_call.1} parent=5 // pred_region
        %s273 = ssub.s32 %s20, 1
        %s274 = sand.u32 %s68, 1
        %s275 = scalar_lea.sflag [#allocation5], %s274
        %s276 = sand.u32 %s68, 1
        %s277 = smul.addr %s276, 256
        %s278 = scalar_lea.vmem [#allocation4], %s277
        // Predicated region
        $region45: #{tpu_custom_call.1} parent=43 // pred_check
          %p279 = pneg %p81
        $region46: #{tpu_custom_call.1} parent=43 // pred_check_branch
          %281 = sbr.rel (%p279) target = $region48
        $region47: #{tpu_custom_call.1} parent=43 // pred_region
          %282 = dma.done %s275, 4096
        $region48: #{tpu_custom_call.1} parent=43 // pred_fallthru
          _
        // Predicated region
        $region49: #{tpu_custom_call.1} parent=43 // pred_check
          %p283 = pneg %p102
        $region50: #{tpu_custom_call.1} parent=43 // pred_check_branch
          %285 = sbr.rel (%p283) target = $region52
        $region51: #{tpu_custom_call.1} parent=43 // pred_region
          %286 = dma.done [#allocation8], 512
        $region52: #{tpu_custom_call.1} parent=43 // pred_fallthru
          _
        // Predicated region
        $region53: #{tpu_custom_call.1} parent=43 // pred_check
          %p287 = pneg %p144
        $region54: #{tpu_custom_call.1} parent=43 // pred_check_branch
          %289 = sbr.rel (%p287) target = $region56
        $region55: #{tpu_custom_call.1} parent=43 // pred_region
          %290 = dma.done [#allocation8], 8192
        $region56: #{tpu_custom_call.1} parent=43 // pred_fallthru
          _
        %p291 = pneg %p53
        %p292 = pneg %p50
        %s293 = sand.u32 %s68, 1
        %s294 = scalar_lea.sflag [#allocation5], %s293
        %s295 = sand.u32 %s68, 1
        %s296 = smul.addr %s295, 256
        %s297 = scalar_lea.vmem [#allocation4], %s296
        %p298 = pneg %p81
        %p299 = pneg %p78
        %p300 = pneg %p102
        %p301 = pneg %p99
        %p302 = pneg %p123
        %p303 = pneg %p120
        %p304 = pneg %p144
        %p305 = pneg %p141
        %p306 = pneg %p165
        %p307 = pneg %p162
        %p308 = pneg %p191
        %p309 = pneg %p188
        %s310 = sand.u32 %s178, 1
        %s311 = scalar_lea.sflag [#allocation6], %s310
        %s312 = sand.u32 %s178, 1
        %s313 = smul.addr %s312, 4
        %s314 = scalar_lea.vmem [#allocation10], %s313
        %s315 = smul.u32 4, %s29
        %s316 = smul.u32 8, %s30
        %p317 = scmp.eq.s32.totalorder %s30, 0
        // Predicated region
        $region57: #{tpu_custom_call.1} parent=43 // pred_check
          %p318 = pneg %p317
        $region58: #{tpu_custom_call.1} parent=43 // pred_check_branch
          %320 = sbr.rel (%p318) target = $region60
        $region59: #{tpu_custom_call.1} parent=43 // pred_region
          %321 = vst [vmem:[#allocation2] sm:$0xff] 0.0
          %322 = vst [vmem:[#allocation2 + $0x8] sm:$0xff] 0.0
          %323 = vst [vmem:[#allocation2 + $0x10] sm:$0xff] 0.0
          %324 = vst [vmem:[#allocation2 + $0x18] sm:$0xff] 0.0
        $region60: #{tpu_custom_call.1} parent=43 // pred_fallthru
          _
        %v325 = vld [vmem:[#allocation2] sm:$0xff]
        %v326 = vld [vmem:[#allocation2 + $0x8] sm:$0xff]
        %v327 = vld [vmem:[#allocation2 + $0x10] sm:$0xff]
        %v328 = vld [vmem:[#allocation2 + $0x18] sm:$0xff]
        %v329 = vld [vmem:[%s278] sm:$0xff]
        %v330 = vld [vmem:[%s278 + $0x40] sm:$0xff]
        %v331 = vld [vmem:[%s278 + $0x80] sm:$0xff]
        %v332 = vld [vmem:[%s278 + $0xc0] sm:$0xff]
        %v333 = vmax.f32 %v329, 1e-06
        %v334 = vmax.f32 %v330, 1e-06
        %v335 = vmax.f32 %v331, 1e-06
        %v336 = vmax.f32 %v332, 1e-06
        %v337 = vmul.f32 %v333, %v333
        %v338 = vmul.f32 %v334, %v334
        %v339 = vmul.f32 %v335, %v335
        %v340 = vmul.f32 %v336, %v336
        %v341 = vmul.f32 %v333, %v337
        %v342 = vmul.f32 %v334, %v338
        %v343 = vmul.f32 %v335, %v339
        %v344 = vmul.f32 %v336, %v340
        %v345 = vadd.f32 %v325, %v341
        %v346 = vadd.f32 %v326, %v342
        %v347 = vadd.f32 %v327, %v343
        %v348 = vadd.f32 %v328, %v344
        %v349 = vld [vmem:[%s278 + $0x8] sm:$0xff]
        %v350 = vld [vmem:[%s278 + $0x48] sm:$0xff]
        %v351 = vld [vmem:[%s278 + $0x88] sm:$0xff]
        %v352 = vld [vmem:[%s278 + $0xc8] sm:$0xff]
        %v353 = vmax.f32 %v349, 1e-06
        %v354 = vmax.f32 %v350, 1e-06
        %v355 = vmax.f32 %v351, 1e-06
        %v356 = vmax.f32 %v352, 1e-06
        %v357 = vmul.f32 %v353, %v353
        %v358 = vmul.f32 %v354, %v354
        %v359 = vmul.f32 %v355, %v355
        %v360 = vmul.f32 %v356, %v356
        %v361 = vmul.f32 %v353, %v357
        %v362 = vmul.f32 %v354, %v358
        %v363 = vmul.f32 %v355, %v359
        %v364 = vmul.f32 %v356, %v360
        %v365 = vadd.f32 %v345, %v361
        %v366 = vadd.f32 %v346, %v362
        %v367 = vadd.f32 %v347, %v363
        %v368 = vadd.f32 %v348, %v364
        %v369 = vld [vmem:[%s278 + $0x10] sm:$0xff]
        %v370 = vld [vmem:[%s278 + $0x50] sm:$0xff]
        %v371 = vld [vmem:[%s278 + $0x90] sm:$0xff]
        %v372 = vld [vmem:[%s278 + $0xd0] sm:$0xff]
        %v373 = vmax.f32 %v369, 1e-06
        %v374 = vmax.f32 %v370, 1e-06
        %v375 = vmax.f32 %v371, 1e-06
        %v376 = vmax.f32 %v372, 1e-06
        %v377 = vmul.f32 %v373, %v373
        %v378 = vmul.f32 %v374, %v374
        %v379 = vmul.f32 %v375, %v375
        %v380 = vmul.f32 %v376, %v376
        %v381 = vmul.f32 %v373, %v377
        %v382 = vmul.f32 %v374, %v378
        %v383 = vmul.f32 %v375, %v379
        %v384 = vmul.f32 %v376, %v380
        %v385 = vadd.f32 %v365, %v381
        %v386 = vadd.f32 %v366, %v382
        %v387 = vadd.f32 %v367, %v383
        %v388 = vadd.f32 %v368, %v384
        %v389 = vld [vmem:[%s278 + $0x18] sm:$0xff]
        %v390 = vld [vmem:[%s278 + $0x58] sm:$0xff]
        %v391 = vld [vmem:[%s278 + $0x98] sm:$0xff]
        %v392 = vld [vmem:[%s278 + $0xd8] sm:$0xff]
        %v393 = vmax.f32 %v389, 1e-06
        %v394 = vmax.f32 %v390, 1e-06
        %v395 = vmax.f32 %v391, 1e-06
        %v396 = vmax.f32 %v392, 1e-06
        %v397 = vmul.f32 %v393, %v393
        %v398 = vmul.f32 %v394, %v394
        %v399 = vmul.f32 %v395, %v395
        %v400 = vmul.f32 %v396, %v396
        %v401 = vmul.f32 %v393, %v397
        %v402 = vmul.f32 %v394, %v398
        %v403 = vmul.f32 %v395, %v399
        %v404 = vmul.f32 %v396, %v400
        %v405 = vadd.f32 %v385, %v401
        %v406 = vadd.f32 %v386, %v402
        %v407 = vadd.f32 %v387, %v403
        %v408 = vadd.f32 %v388, %v404
        %v409 = vld [vmem:[%s278 + $0x20] sm:$0xff]
        %v410 = vld [vmem:[%s278 + $0x60] sm:$0xff]
        %v411 = vld [vmem:[%s278 + $0xa0] sm:$0xff]
        %v412 = vld [vmem:[%s278 + $0xe0] sm:$0xff]
        %v413 = vmax.f32 %v409, 1e-06
        %v414 = vmax.f32 %v410, 1e-06
        %v415 = vmax.f32 %v411, 1e-06
        %v416 = vmax.f32 %v412, 1e-06
        %v417 = vmul.f32 %v413, %v413
        %v418 = vmul.f32 %v414, %v414
        %v419 = vmul.f32 %v415, %v415
        %v420 = vmul.f32 %v416, %v416
        %v421 = vmul.f32 %v413, %v417
        %v422 = vmul.f32 %v414, %v418
        %v423 = vmul.f32 %v415, %v419
        %v424 = vmul.f32 %v416, %v420
        %v425 = vadd.f32 %v405, %v421
        %v426 = vadd.f32 %v406, %v422
        %v427 = vadd.f32 %v407, %v423
        %v428 = vadd.f32 %v408, %v424
        %v429 = vld [vmem:[%s278 + $0x28] sm:$0xff]
        %v430 = vld [vmem:[%s278 + $0x68] sm:$0xff]
        %v431 = vld [vmem:[%s278 + $0xa8] sm:$0xff]
        %v432 = vld [vmem:[%s278 + $0xe8] sm:$0xff]
        %v433 = vmax.f32 %v429, 1e-06
        %v434 = vmax.f32 %v430, 1e-06
        %v435 = vmax.f32 %v431, 1e-06
        %v436 = vmax.f32 %v432, 1e-06
        %v437 = vmul.f32 %v433, %v433
        %v438 = vmul.f32 %v434, %v434
        %v439 = vmul.f32 %v435, %v435
        %v440 = vmul.f32 %v436, %v436
        %v441 = vmul.f32 %v433, %v437
        %v442 = vmul.f32 %v434, %v438
        %v443 = vmul.f32 %v435, %v439
        %v444 = vmul.f32 %v436, %v440
        %v445 = vadd.f32 %v425, %v441
        %v446 = vadd.f32 %v426, %v442
        %v447 = vadd.f32 %v427, %v443
        %v448 = vadd.f32 %v428, %v444
        %v449 = vld [vmem:[%s278 + $0x30] sm:$0xff]
        %v450 = vld [vmem:[%s278 + $0x70] sm:$0xff]
        %v451 = vld [vmem:[%s278 + $0xb0] sm:$0xff]
        %v452 = vld [vmem:[%s278 + $0xf0] sm:$0xff]
        %v453 = vmax.f32 %v449, 1e-06
        %v454 = vmax.f32 %v450, 1e-06
        %v455 = vmax.f32 %v451, 1e-06
        %v456 = vmax.f32 %v452, 1e-06
        %v457 = vmul.f32 %v453, %v453
        %v458 = vmul.f32 %v454, %v454
        %v459 = vmul.f32 %v455, %v455
        %v460 = vmul.f32 %v456, %v456
        %v461 = vmul.f32 %v453, %v457
        %v462 = vmul.f32 %v454, %v458
        %v463 = vmul.f32 %v455, %v459
        %v464 = vmul.f32 %v456, %v460
        %v465 = vadd.f32 %v445, %v461
        %v466 = vadd.f32 %v446, %v462
        %v467 = vadd.f32 %v447, %v463
        %v468 = vadd.f32 %v448, %v464
        %v469 = vld [vmem:[%s278 + $0x38] sm:$0xff]
        %v470 = vld [vmem:[%s278 + $0x78] sm:$0xff]
        %v471 = vld [vmem:[%s278 + $0xb8] sm:$0xff]
        %v472 = vld [vmem:[%s278 + $0xf8] sm:$0xff]
        %v473 = vmax.f32 %v469, 1e-06
        %v474 = vmax.f32 %v470, 1e-06
        %v475 = vmax.f32 %v471, 1e-06
        %v476 = vmax.f32 %v472, 1e-06
        %v477 = vmul.f32 %v473, %v473
        %v478 = vmul.f32 %v474, %v474
        %v479 = vmul.f32 %v475, %v475
        %v480 = vmul.f32 %v476, %v476
        %v481 = vmul.f32 %v473, %v477
        %v482 = vmul.f32 %v474, %v478
        %v483 = vmul.f32 %v475, %v479
        %v484 = vmul.f32 %v476, %v480
        %v485 = vadd.f32 %v465, %v481
        %v486 = vadd.f32 %v466, %v482
        %v487 = vadd.f32 %v467, %v483
        %v488 = vadd.f32 %v468, %v484
        %489 = vst [vmem:[#allocation2] sm:$0xff] %v485
        %490 = vst [vmem:[#allocation2 + $0x8] sm:$0xff] %v486
        %491 = vst [vmem:[#allocation2 + $0x10] sm:$0xff] %v487
        %492 = vst [vmem:[#allocation2 + $0x18] sm:$0xff] %v488
        // Predicated region
        $region61: #{tpu_custom_call.1} parent=43 // pred_check
          %p493 = pneg %p317
        $region62: #{tpu_custom_call.1} parent=43 // pred_check_branch
          %495 = sbr.rel (%p493) target = $region64
        $region63: #{tpu_custom_call.1} parent=43 // pred_region
          %v496 = vld [vmem:[#allocation2] sm:$0xff]
          %v497 = vld [vmem:[#allocation2 + $0x8] sm:$0xff]
          %v498 = vld [vmem:[#allocation2 + $0x10] sm:$0xff]
          %v499 = vld [vmem:[#allocation2 + $0x18] sm:$0xff]
          %500 = vadd.xlane.f32.xlu0 %v496
          %v501 = vpop.xlane.xlu0 %500
          %502 = vadd.xlane.f32.xlu0 %v497
          %v503 = vpop.xlane.xlu0 %502
          %504 = vadd.xlane.f32.xlu0 %v498
          %v505 = vpop.xlane.xlu0 %504
          %506 = vadd.xlane.f32.xlu0 %v499
          %v507 = vpop.xlane.xlu0 %506
          %v508 = vmul.f32 %v501, 0.0009765625
          %v509 = vmul.f32 %v503, 0.0009765625
          %v510 = vmul.f32 %v505, 0.0009765625
          %v511 = vmul.f32 %v507, 0.0009765625
          %v512 = vlog2.pop %v508
          %v513 = vmul.f32 %v512, 0.6931472
          %v514 = vlog2.pop %v509
          %v515 = vmul.f32 %v514, 0.6931472
          %v516 = vlog2.pop %v510
          %v517 = vmul.f32 %v516, 0.6931472
          %v518 = vlog2.pop %v511
          %v519 = vmul.f32 %v518, 0.6931472
          %v520 = vmul.f32 %v513, 0.33333334
          %v521 = vmul.f32 %v515, 0.33333334
          %v522 = vmul.f32 %v517, 0.33333334
          %v523 = vmul.f32 %v519, 0.33333334
          %v524 = vmul.f32 %v520, 1.442695
          %v525 = vpow.pop %v524
          %v526 = vmul.f32 %v521, 1.442695
          %v527 = vpow.pop %v526
          %v528 = vmul.f32 %v522, 1.442695
          %v529 = vpow.pop %v528
          %v530 = vmul.f32 %v523, 1.442695
          %v531 = vpow.pop %v530
          %v532 = vxor.u32 %v525, 2147483648
          %v533 = vxor.u32 %v527, 2147483648
          %v534 = vxor.u32 %v529, 2147483648
          %v535 = vxor.u32 %v531, 2147483648
          %v536 = vmul.f32 %v532, 1.442695
          %v537 = vpow.pop %v536
          %v538 = vmul.f32 %v533, 1.442695
          %v539 = vpow.pop %v538
          %v540 = vmul.f32 %v534, 1.442695
          %v541 = vpow.pop %v540
          %v542 = vmul.f32 %v535, 1.442695
          %v543 = vpow.pop %v542
          %v544 = vadd.f32 %v537, 1.0
          %v545 = vadd.f32 %v539, 1.0
          %v546 = vadd.f32 %v541, 1.0
          %v547 = vadd.f32 %v543, 1.0
          %v548 = vrcp.pop %v544
          %v549 = vmul.f32 1.0, %v548
          %v550 = vrcp.pop %v545
          %v551 = vmul.f32 1.0, %v550
          %v552 = vrcp.pop %v546
          %v553 = vmul.f32 1.0, %v552
          %v554 = vrcp.pop %v547
          %v555 = vmul.f32 1.0, %v554
          %v556 = vmul.f32 %v525, %v549
          %v557 = vmul.f32 %v527, %v551
          %v558 = vmul.f32 %v529, %v553
          %v559 = vmul.f32 %v531, %v555
          %v560 = vld [vmem:[#allocation7] sm:$0xff]
          %v561 = vld [vmem:[#allocation7 + $0x8] sm:$0xff]
          %v562 = vld [vmem:[#allocation7 + $0x10] sm:$0xff]
          %v563 = vld [vmem:[#allocation7 + $0x18] sm:$0xff]
          %v564 = vld [vmem:[%s3] sm:$0xf]
          %v566 = vlaneseq
          %v567 = vshrl.u32 %v566, 7
          %v568 = vsub.s32 0, %v567
          %v569 = vrot.slane %v564, %v568
          %v570 = vlaneseq
          %v571 = vshrl.u32 %v570, 7
          %v572 = vsub.s32 1, %v571
          %v573 = vrot.slane %v564, %v572
          %v574 = vlaneseq
          %v575 = vshrl.u32 %v574, 7
          %v576 = vsub.s32 2, %v575
          %v577 = vrot.slane %v564, %v576
          %v578 = vlaneseq
          %v579 = vshrl.u32 %v578, 7
          %v580 = vsub.s32 3, %v579
          %v581 = vrot.slane %v564, %v580
          %v590 = vlaneseq
          %v591 = vand.u32 %v590, 127
          %v592 = vlaneseq
          %v593 = vshrl.u32 %v592, 7
          %v594 = vsub.s32 %v591, %v593
          %v595 = vrot.slane %v556, %v594
          %v596 = vlaneseq
          %v597 = vshrl.u32 %v596, 7
          %v598 = vsub.s32 %v591, %v597
          %v599 = vrot.slane %v557, %v598
          %v600 = vlaneseq
          %v601 = vshrl.u32 %v600, 7
          %v602 = vsub.s32 %v591, %v601
          %v603 = vrot.slane %v558, %v602
          %v604 = vlaneseq
          %v605 = vshrl.u32 %v604, 7
          %v606 = vsub.s32 %v591, %v605
          %v607 = vrot.slane %v559, %v606
          %vm608 = vcmask 1041409
          %v609 = vsel %vm608, %v599, %v595
          %vm610 = vcmask 1042434
          %v611 = vsel %vm610, %v603, %v609
          %vm612 = vcmask 1043459
          %v613 = vsel %vm612, %v607, %v611
          %vm614 = vcmask 64512
          %v615 = vsel %vm614, %v613, 0
          %617 = vmatprep.subr.mxu0 %v561
          %618 = vmatpush1.msra.mxu0 %v560
          %619 = vmatprep.subr.mxu0 0.0
          %620 = vmatpush1.msra.mxu0 0.0
          %621 = vmatprep.subr.mxu0 0.0
          %622 = vmatpush1.msra.mxu0 0.0
          %623 = vmatprep.subr.mxu0 0.0
          %624 = vmatpush1.msra.mxu0 0.0
          %625 = vmatprep.subr.mxu0 0.0
          %626 = vmatpush1.msra.mxu0 0.0
          %627 = vmatprep.subr.mxu0 0.0
          %628 = vmatpush1.msra.mxu0 0.0
          %629 = vmatprep.subr.mxu0 0.0
          %630 = vmatpush1.msra.mxu0 0.0
          %631 = vmatprep.subr.mxu0 0.0
          %632 = vmatpush1.msra.mxu0 0.0
          %633 = vmatprep.subr.mxu0 0.0
          %634 = vmatpush1.msra.mxu0 0.0
          %635 = vmatprep.subr.mxu0 0.0
          %636 = vmatpush1.msra.mxu0 0.0
          %637 = vmatprep.subr.mxu0 0.0
          %638 = vmatpush1.msra.mxu0 0.0
          %639 = vmatprep.subr.mxu0 0.0
          %640 = vmatpush1.msra.mxu0 0.0
          %641 = vmatprep.subr.mxu0 0.0
          %642 = vmatpush1.msra.mxu0 0.0
          %643 = vmatprep.subr.mxu0 0.0
          %644 = vmatpush1.msra.mxu0 0.0
          %645 = vmatprep.subr.mxu0 0.0
          %646 = vmatpush1.msra.mxu0 0.0
          %647 = vmatprep.subr.mxu0 0.0
          %648 = vmatpush1.msra.mxu0 0.0
          %649 = vmatprep.subr.mxu0 0.0
          %650 = vmatpush1.msra.mxu0 0.0
          %651 = vmatprep.subr.mxu0 0.0
          %652 = vmatpush1.msra.mxu0 0.0
          %653 = vmatprep.subr.mxu0 0.0
          %654 = vmatpush1.msra.mxu0 0.0
          %655 = vmatprep.subr.mxu0 0.0
          %656 = vmatpush1.msra.mxu0 0.0
          %657 = vmatprep.subr.mxu0 0.0
          %658 = vmatpush1.msra.mxu0 0.0
          %659 = vmatprep.subr.mxu0 0.0
          %660 = vmatpush1.msra.mxu0 0.0
          %661 = vmatprep.subr.mxu0 0.0
          %662 = vmatpush1.msra.mxu0 0.0
          %663 = vmatprep.subr.mxu0 0.0
          %664 = vmatpush1.msra.mxu0 0.0
          %665 = vmatprep.subr.mxu0 0.0
          %666 = vmatpush1.msra.mxu0 0.0
          %667 = vmatprep.subr.mxu0 0.0
          %668 = vmatpush1.msra.mxu0 0.0
          %669 = vmatprep.subr.mxu0 0.0
          %670 = vmatpush1.msra.mxu0 0.0
          %671 = vmatprep.subr.mxu0 0.0
          %672 = vmatpush1.msra.mxu0 0.0
          %673 = vmatprep.subr.mxu0 0.0
          %674 = vmatpush1.msra.mxu0 0.0
          %675 = vmatprep.subr.mxu0 0.0
          %676 = vmatpush1.msra.mxu0 0.0
          %677 = vmatprep.subr.mxu0 0.0
          %678 = vmatpush1.msra.mxu0 0.0
          %679 = vmatprep.subr.mxu0 0.0
          %680 = vmatpush1.msra.mxu0 0.0
          %681 = vmatprep.mubr.f32.mxu0 0.0
          %682 = vmatmul.mubr.f32.gmra.mrb[0].mxu0 %v615
          %v683 = vpop.f32.mrb[0].mxu0
          %v684 = vadd.f32 %v569, %v683
          %v685 = vpop.f32.mrb[0].mxu0
          %v686 = vadd.f32 %v573, %v685
          %687 = vdwg.mxu0
          %688 = vmatprep.subr.mxu0 %v563
          %689 = vmatpush1.msra.mxu0 %v562
          %690 = vmatprep.subr.mxu0 0.0
          %691 = vmatpush1.msra.mxu0 0.0
          %692 = vmatprep.subr.mxu0 0.0
          %693 = vmatpush1.msra.mxu0 0.0
          %694 = vmatprep.subr.mxu0 0.0
          %695 = vmatpush1.msra.mxu0 0.0
          %696 = vmatprep.subr.mxu0 0.0
          %697 = vmatpush1.msra.mxu0 0.0
          %698 = vmatprep.subr.mxu0 0.0
          %699 = vmatpush1.msra.mxu0 0.0
          %700 = vmatprep.subr.mxu0 0.0
          %701 = vmatpush1.msra.mxu0 0.0
          %702 = vmatprep.subr.mxu0 0.0
          %703 = vmatpush1.msra.mxu0 0.0
          %704 = vmatprep.subr.mxu0 0.0
          %705 = vmatpush1.msra.mxu0 0.0
          %706 = vmatprep.subr.mxu0 0.0
          %707 = vmatpush1.msra.mxu0 0.0
          %708 = vmatprep.subr.mxu0 0.0
          %709 = vmatpush1.msra.mxu0 0.0
          %710 = vmatprep.subr.mxu0 0.0
          %711 = vmatpush1.msra.mxu0 0.0
          %712 = vmatprep.subr.mxu0 0.0
          %713 = vmatpush1.msra.mxu0 0.0
          %714 = vmatprep.subr.mxu0 0.0
          %715 = vmatpush1.msra.mxu0 0.0
          %716 = vmatprep.subr.mxu0 0.0
          %717 = vmatpush1.msra.mxu0 0.0
          %718 = vmatprep.subr.mxu0 0.0
          %719 = vmatpush1.msra.mxu0 0.0
          %720 = vmatprep.subr.mxu0 0.0
          %721 = vmatpush1.msra.mxu0 0.0
          %722 = vmatprep.subr.mxu0 0.0
          %723 = vmatpush1.msra.mxu0 0.0
          %724 = vmatprep.subr.mxu0 0.0
          %725 = vmatpush1.msra.mxu0 0.0
          %726 = vmatprep.subr.mxu0 0.0
          %727 = vmatpush1.msra.mxu0 0.0
          %728 = vmatprep.subr.mxu0 0.0
          %729 = vmatpush1.msra.mxu0 0.0
          %730 = vmatprep.subr.mxu0 0.0
          %731 = vmatpush1.msra.mxu0 0.0
          %732 = vmatprep.subr.mxu0 0.0
          %733 = vmatpush1.msra.mxu0 0.0
          %734 = vmatprep.subr.mxu0 0.0
          %735 = vmatpush1.msra.mxu0 0.0
          %736 = vmatprep.subr.mxu0 0.0
          %737 = vmatpush1.msra.mxu0 0.0
          %738 = vmatprep.subr.mxu0 0.0
          %739 = vmatpush1.msra.mxu0 0.0
          %740 = vmatprep.subr.mxu0 0.0
          %741 = vmatpush1.msra.mxu0 0.0
          %742 = vmatprep.subr.mxu0 0.0
          %743 = vmatpush1.msra.mxu0 0.0
          %744 = vmatprep.subr.mxu0 0.0
          %745 = vmatpush1.msra.mxu0 0.0
          %746 = vmatprep.subr.mxu0 0.0
          %747 = vmatpush1.msra.mxu0 0.0
          %748 = vmatprep.subr.mxu0 0.0
          %749 = vmatpush1.msra.mxu0 0.0
          %750 = vmatprep.subr.mxu0 0.0
          %751 = vmatpush1.msra.mxu0 0.0
          %752 = vmatprep.mubr.f32.mxu0 0.0
          %753 = vmatmul.mubr.f32.gmra.mrb[0].mxu0 %v615
          %v754 = vpop.f32.mrb[0].mxu0
          %v755 = vadd.f32 %v577, %v754
          %v756 = vpop.f32.mrb[0].mxu0
          %v757 = vadd.f32 %v581, %v756
          %758 = vdwg.mxu0
          %v759 = vxor.u32 %v684, 2147483648
          %v760 = vxor.u32 %v686, 2147483648
          %v761 = vxor.u32 %v755, 2147483648
          %v762 = vxor.u32 %v757, 2147483648
          %v763 = vmul.f32 %v759, 1.442695
          %v764 = vpow.pop %v763
          %v765 = vmul.f32 %v760, 1.442695
          %v766 = vpow.pop %v765
          %v767 = vmul.f32 %v761, 1.442695
          %v768 = vpow.pop %v767
          %v769 = vmul.f32 %v762, 1.442695
          %v770 = vpow.pop %v769
          %v771 = vadd.f32 %v764, 1.0
          %v772 = vadd.f32 %v766, 1.0
          %v773 = vadd.f32 %v768, 1.0
          %v774 = vadd.f32 %v770, 1.0
          %v775 = vrcp.pop %v771
          %v776 = vmul.f32 1.0, %v775
          %v777 = vrcp.pop %v772
          %v778 = vmul.f32 1.0, %v777
          %v779 = vrcp.pop %v773
          %v780 = vmul.f32 1.0, %v779
          %v781 = vrcp.pop %v774
          %v782 = vmul.f32 1.0, %v781
          %v783 = vmul.f32 %v684, %v776
          %v784 = vmul.f32 %v686, %v778
          %v785 = vmul.f32 %v755, %v780
          %v786 = vmul.f32 %v757, %v782
          %v787 = vld [vmem:[#allocation9] sm:$0xff]
          %v788 = vld [vmem:[#allocation9 + $0x8] sm:$0xff]
          %v789 = vld [vmem:[#allocation9 + $0x10] sm:$0xff]
          %v790 = vld [vmem:[#allocation9 + $0x18] sm:$0xff]
          %v791 = vld [vmem:[#allocation9 + $0x20] sm:$0xff]
          %v792 = vld [vmem:[#allocation9 + $0x28] sm:$0xff]
          %v793 = vld [vmem:[#allocation9 + $0x30] sm:$0xff]
          %v794 = vld [vmem:[#allocation9 + $0x38] sm:$0xff]
          %v795 = vld [vmem:[#allocation9 + $0x40] sm:$0xff]
          %v796 = vld [vmem:[#allocation9 + $0x48] sm:$0xff]
          %v797 = vld [vmem:[#allocation9 + $0x50] sm:$0xff]
          %v798 = vld [vmem:[#allocation9 + $0x58] sm:$0xff]
          %v799 = vld [vmem:[#allocation9 + $0x60] sm:$0xff]
          %v800 = vld [vmem:[#allocation9 + $0x68] sm:$0xff]
          %v801 = vld [vmem:[#allocation9 + $0x70] sm:$0xff]
          %v802 = vld [vmem:[#allocation9 + $0x78] sm:$0xff]
          %v803 = vld [vmem:[#allocation9 + $0x80] sm:$0xff]
          %v804 = vld [vmem:[#allocation9 + $0x88] sm:$0xff]
          %v805 = vld [vmem:[#allocation9 + $0x90] sm:$0xff]
          %v806 = vld [vmem:[#allocation9 + $0x98] sm:$0xff]
          %v807 = vld [vmem:[#allocation9 + $0xa0] sm:$0xff]
          %v808 = vld [vmem:[#allocation9 + $0xa8] sm:$0xff]
          %v809 = vld [vmem:[#allocation9 + $0xb0] sm:$0xff]
          %v810 = vld [vmem:[#allocation9 + $0xb8] sm:$0xff]
          %v811 = vld [vmem:[#allocation9 + $0xc0] sm:$0xff]
          %v812 = vld [vmem:[#allocation9 + $0xc8] sm:$0xff]
          %v813 = vld [vmem:[#allocation9 + $0xd0] sm:$0xff]
          %v814 = vld [vmem:[#allocation9 + $0xd8] sm:$0xff]
          %v815 = vld [vmem:[#allocation9 + $0xe0] sm:$0xff]
          %v816 = vld [vmem:[#allocation9 + $0xe8] sm:$0xff]
          %v817 = vld [vmem:[#allocation9 + $0xf0] sm:$0xff]
          %v818 = vld [vmem:[#allocation9 + $0xf8] sm:$0xff]
          %v819 = vld [vmem:[#allocation9 + $0x100] sm:$0xff]
          %v820 = vld [vmem:[#allocation9 + $0x108] sm:$0xff]
          %v821 = vld [vmem:[#allocation9 + $0x110] sm:$0xff]
          %v822 = vld [vmem:[#allocation9 + $0x118] sm:$0xff]
          %v823 = vld [vmem:[#allocation9 + $0x120] sm:$0xff]
          %v824 = vld [vmem:[#allocation9 + $0x128] sm:$0xff]
          %v825 = vld [vmem:[#allocation9 + $0x130] sm:$0xff]
          %v826 = vld [vmem:[#allocation9 + $0x138] sm:$0xff]
          %v827 = vld [vmem:[#allocation9 + $0x140] sm:$0xff]
          %v828 = vld [vmem:[#allocation9 + $0x148] sm:$0xff]
          %v829 = vld [vmem:[#allocation9 + $0x150] sm:$0xff]
          %v830 = vld [vmem:[#allocation9 + $0x158] sm:$0xff]
          %v831 = vld [vmem:[#allocation9 + $0x160] sm:$0xff]
          %v832 = vld [vmem:[#allocation9 + $0x168] sm:$0xff]
          %v833 = vld [vmem:[#allocation9 + $0x170] sm:$0xff]
          %v834 = vld [vmem:[#allocation9 + $0x178] sm:$0xff]
          %v835 = vld [vmem:[#allocation9 + $0x180] sm:$0xff]
          %v836 = vld [vmem:[#allocation9 + $0x188] sm:$0xff]
          %v837 = vld [vmem:[#allocation9 + $0x190] sm:$0xff]
          %v838 = vld [vmem:[#allocation9 + $0x198] sm:$0xff]
          %v839 = vld [vmem:[#allocation9 + $0x1a0] sm:$0xff]
          %v840 = vld [vmem:[#allocation9 + $0x1a8] sm:$0xff]
          %v841 = vld [vmem:[#allocation9 + $0x1b0] sm:$0xff]
          %v842 = vld [vmem:[#allocation9 + $0x1b8] sm:$0xff]
          %v843 = vld [vmem:[#allocation9 + $0x1c0] sm:$0xff]
          %v844 = vld [vmem:[#allocation9 + $0x1c8] sm:$0xff]
          %v845 = vld [vmem:[#allocation9 + $0x1d0] sm:$0xff]
          %v846 = vld [vmem:[#allocation9 + $0x1d8] sm:$0xff]
          %v847 = vld [vmem:[#allocation9 + $0x1e0] sm:$0xff]
          %v848 = vld [vmem:[#allocation9 + $0x1e8] sm:$0xff]
          %v849 = vld [vmem:[#allocation9 + $0x1f0] sm:$0xff]
          %v850 = vld [vmem:[#allocation9 + $0x1f8] sm:$0xff]
          %v851 = vld [vmem:[%s5] sm:$0x1]
          %v853 = vlaneseq
          %v854 = vshrl.u32 %v853, 7
          %v855 = vsub.s32 0, %v854
          %v856 = vrot.slane %v851, %v855
          %858 = vmatprep.subr.mxu0 0.0
          %859 = vmatpush1.msra.mxu0 %v787
          %860 = vmatprep.subr.mxu0 0.0
          %861 = vmatpush1.msra.mxu0 %v788
          %862 = vmatprep.subr.mxu0 0.0
          %863 = vmatpush1.msra.mxu0 %v789
          %864 = vmatprep.subr.mxu0 0.0
          %865 = vmatpush1.msra.mxu0 %v790
          %866 = vmatprep.subr.mxu0 0.0
          %867 = vmatpush1.msra.mxu0 %v791
          %868 = vmatprep.subr.mxu0 0.0
          %869 = vmatpush1.msra.mxu0 %v792
          %870 = vmatprep.subr.mxu0 0.0
          %871 = vmatpush1.msra.mxu0 %v793
          %872 = vmatprep.subr.mxu0 0.0
          %873 = vmatpush1.msra.mxu0 %v794
          %874 = vmatprep.subr.mxu0 0.0
          %875 = vmatpush1.msra.mxu0 %v795
          %876 = vmatprep.subr.mxu0 0.0
          %877 = vmatpush1.msra.mxu0 %v796
          %878 = vmatprep.subr.mxu0 0.0
          %879 = vmatpush1.msra.mxu0 %v797
          %880 = vmatprep.subr.mxu0 0.0
          %881 = vmatpush1.msra.mxu0 %v798
          %882 = vmatprep.subr.mxu0 0.0
          %883 = vmatpush1.msra.mxu0 %v799
          %884 = vmatprep.subr.mxu0 0.0
          %885 = vmatpush1.msra.mxu0 %v800
          %886 = vmatprep.subr.mxu0 0.0
          %887 = vmatpush1.msra.mxu0 %v801
          %888 = vmatprep.subr.mxu0 0.0
          %889 = vmatpush1.msra.mxu0 %v802
          %890 = vmatprep.subr.mxu0 0.0
          %891 = vmatpush1.msra.mxu0 %v803
          %892 = vmatprep.subr.mxu0 0.0
          %893 = vmatpush1.msra.mxu0 %v804
          %894 = vmatprep.subr.mxu0 0.0
          %895 = vmatpush1.msra.mxu0 %v805
          %896 = vmatprep.subr.mxu0 0.0
          %897 = vmatpush1.msra.mxu0 %v806
          %898 = vmatprep.subr.mxu0 0.0
          %899 = vmatpush1.msra.mxu0 %v807
          %900 = vmatprep.subr.mxu0 0.0
          %901 = vmatpush1.msra.mxu0 %v808
          %902 = vmatprep.subr.mxu0 0.0
          %903 = vmatpush1.msra.mxu0 %v809
          %904 = vmatprep.subr.mxu0 0.0
          %905 = vmatpush1.msra.mxu0 %v810
          %906 = vmatprep.subr.mxu0 0.0
          %907 = vmatpush1.msra.mxu0 %v811
          %908 = vmatprep.subr.mxu0 0.0
          %909 = vmatpush1.msra.mxu0 %v812
          %910 = vmatprep.subr.mxu0 0.0
          %911 = vmatpush1.msra.mxu0 %v813
          %912 = vmatprep.subr.mxu0 0.0
          %913 = vmatpush1.msra.mxu0 %v814
          %914 = vmatprep.subr.mxu0 0.0
          %915 = vmatpush1.msra.mxu0 %v815
          %916 = vmatprep.subr.mxu0 0.0
          %917 = vmatpush1.msra.mxu0 %v816
          %918 = vmatprep.subr.mxu0 0.0
          %919 = vmatpush1.msra.mxu0 %v817
          %920 = vmatprep.subr.mxu0 0.0
          %921 = vmatpush1.msra.mxu0 %v818
          %922 = vmatprep.mubr.f32.mxu0 %v784
          %923 = vmatmul.mubr.f32.gmra.mrb[0].mxu0 %v783
          %v924 = vpop.f32.mrb[0].mxu0
          %v925 = vadd.f32 %v856, %v924
          %v926 = vpop.f32.mrb[0].mxu0
          %927 = vdwg.mxu0
          %928 = vmatprep.subr.mxu0 0.0
          %929 = vmatpush1.msra.mxu0 %v819
          %930 = vmatprep.subr.mxu0 0.0
          %931 = vmatpush1.msra.mxu0 %v820
          %932 = vmatprep.subr.mxu0 0.0
          %933 = vmatpush1.msra.mxu0 %v821
          %934 = vmatprep.subr.mxu0 0.0
          %935 = vmatpush1.msra.mxu0 %v822
          %936 = vmatprep.subr.mxu0 0.0
          %937 = vmatpush1.msra.mxu0 %v823
          %938 = vmatprep.subr.mxu0 0.0
          %939 = vmatpush1.msra.mxu0 %v824
          %940 = vmatprep.subr.mxu0 0.0
          %941 = vmatpush1.msra.mxu0 %v825
          %942 = vmatprep.subr.mxu0 0.0
          %943 = vmatpush1.msra.mxu0 %v826
          %944 = vmatprep.subr.mxu0 0.0
          %945 = vmatpush1.msra.mxu0 %v827
          %946 = vmatprep.subr.mxu0 0.0
          %947 = vmatpush1.msra.mxu0 %v828
          %948 = vmatprep.subr.mxu0 0.0
          %949 = vmatpush1.msra.mxu0 %v829
          %950 = vmatprep.subr.mxu0 0.0
          %951 = vmatpush1.msra.mxu0 %v830
          %952 = vmatprep.subr.mxu0 0.0
          %953 = vmatpush1.msra.mxu0 %v831
          %954 = vmatprep.subr.mxu0 0.0
          %955 = vmatpush1.msra.mxu0 %v832
          %956 = vmatprep.subr.mxu0 0.0
          %957 = vmatpush1.msra.mxu0 %v833
          %958 = vmatprep.subr.mxu0 0.0
          %959 = vmatpush1.msra.mxu0 %v834
          %960 = vmatprep.subr.mxu0 0.0
          %961 = vmatpush1.msra.mxu0 %v835
          %962 = vmatprep.subr.mxu0 0.0
          %963 = vmatpush1.msra.mxu0 %v836
          %964 = vmatprep.subr.mxu0 0.0
          %965 = vmatpush1.msra.mxu0 %v837
          %966 = vmatprep.subr.mxu0 0.0
          %967 = vmatpush1.msra.mxu0 %v838
          %968 = vmatprep.subr.mxu0 0.0
          %969 = vmatpush1.msra.mxu0 %v839
          %970 = vmatprep.subr.mxu0 0.0
          %971 = vmatpush1.msra.mxu0 %v840
          %972 = vmatprep.subr.mxu0 0.0
          %973 = vmatpush1.msra.mxu0 %v841
          %974 = vmatprep.subr.mxu0 0.0
          %975 = vmatpush1.msra.mxu0 %v842
          %976 = vmatprep.subr.mxu0 0.0
          %977 = vmatpush1.msra.mxu0 %v843
          %978 = vmatprep.subr.mxu0 0.0
          %979 = vmatpush1.msra.mxu0 %v844
          %980 = vmatprep.subr.mxu0 0.0
          %981 = vmatpush1.msra.mxu0 %v845
          %982 = vmatprep.subr.mxu0 0.0
          %983 = vmatpush1.msra.mxu0 %v846
          %984 = vmatprep.subr.mxu0 0.0
          %985 = vmatpush1.msra.mxu0 %v847
          %986 = vmatprep.subr.mxu0 0.0
          %987 = vmatpush1.msra.mxu0 %v848
          %988 = vmatprep.subr.mxu0 0.0
          %989 = vmatpush1.msra.mxu0 %v849
          %990 = vmatprep.subr.mxu0 0.0
          %991 = vmatpush1.msra.mxu0 %v850
          %992 = vmatprep.mubr.f32.mxu0 %v786
          %993 = vmatmul.mubr.f32.gmra.mrb[0].mxu0 %v785
          %v994 = vpop.f32.mrb[0].mxu0
          %v995 = vadd.f32 %v925, %v994
          %v996 = vpop.f32.mrb[0].mxu0
          %997 = vdwg.mxu0
          %998 = vst [vmem:[%s314] sm:$0xf] %v995
        $region64: #{tpu_custom_call.1} parent=43 // pred_fallthru
          _
        %s999 = sand.u32 %s178, 1
        %s1000 = scalar_lea.sflag [#allocation6], %s999
        %s1001 = sand.u32 %s178, 1
        %s1002 = smul.addr %s1001, 4
        %s1003 = scalar_lea.vmem [#allocation10], %s1002
        // Predicated region
        $region65: #{tpu_custom_call.1} parent=43 // pred_check
          %p1004 = pneg %p188
        $region66: #{tpu_custom_call.1} parent=43 // pred_check_branch
          %1006 = sbr.rel (%p1004) target = $region68
        $region67: #{tpu_custom_call.1} parent=43 // pred_region
          %s1008 = ssub.s32 64, 64
          %1009 = vsyncadd %s1000, %s1008
          %s1010 = smul.addr %s29, 64
          %s1011 = scalar_lea.hbm %s6, %s1010
          %s1013 = sshll.u32 %s1003, 4
          %s1014 = int_to_ptr.vmem [resolvable:$true] %s1013
          %1016 = dma.vmem_to_hbm [thread:$0]  %s1014, 64, %s1011, %s1000
        $region68: #{tpu_custom_call.1} parent=43 // pred_fallthru
          _
      $region44: #{tpu_custom_call.1} parent=5 // pred_fallthru
        _
      %p1017 = scmp.le.s32.totalorder 2, %s20
      // Predicated region
      $region69: #{tpu_custom_call.1} parent=5 // pred_check
        %p1018 = pneg %p1017
      $region70: #{tpu_custom_call.1} parent=5 // pred_check_branch
        %1020 = sbr.rel (%p1018) target = $region72
      $region71: #{tpu_custom_call.1} parent=5 // pred_region
        %s1021 = ssub.s32 %s20, 2
        // Predicated region
        $region73: #{tpu_custom_call.1} parent=71 // pred_check
          %p1022 = pneg %p194
        $region74: #{tpu_custom_call.1} parent=71 // pred_check_branch
          %1024 = sbr.rel (%p1022) target = $region76
        $region75: #{tpu_custom_call.1} parent=71 // pred_region
          %s1025 = sand.u32 %s179, 1
          %s1026 = scalar_lea.sflag [#allocation6], %s1025
          %s1027 = sand.u32 %s179, 1
          %s1028 = smul.addr %s1027, 4
          %s1029 = scalar_lea.vmem [#allocation10], %s1028
          %1030 = dma.done %s1026, 64
        $region76: #{tpu_custom_call.1} parent=71 // pred_fallthru
          _
      $region72: #{tpu_custom_call.1} parent=5 // pred_fallthru
        _
    $region6: #{tpu_custom_call.1} parent=1 // loop_footer
      %s24 = sadd.s32 1, %s20
    $region7: #{tpu_custom_call.1} parent=1 // loop_footer_branch
      %19 = sbr.rel target = $region3
    $region8: #{tpu_custom_call.1} parent=1 // loop_exit
      _
    %1031 = vsyncpa [#allocation5], 1
    %s1032 = scalar_lea.sflag [#allocation5], 1
    %1033 = vsyncpa %s1032, 1
    %1034 = vsyncpa [#allocation8], 1
    %1035 = vsyncpa [#allocation6], 1
    %s1036 = scalar_lea.sflag [#allocation6], 1
    %1037 = vsyncpa %s1036, 1

</llo_original>
